<compile_context>
chip_gen: v6e
topology: v6e:2x2x1
jax: 0.10.0
libtpu: 0.0.40
codegen_flags: <defaults>
</compile_context>

<pallas_src>
import functools

import jax
import jax.numpy as jnp
from jax.experimental import pallas as pl
from jax.experimental.pallas import tpu as pltpu

N_MEMBERS = 5   # ensemble size (static)
LANE = 128      # TPU lane width


def _round_up(v, m):
    return (v + m - 1) // m * m


def _median_of_5(p0, p1, p2, p3, p4):
    # Devillard "opt_med5" selection network (7 compare-exchanges), with the
    # unused half of each exchange pruned -> 10 min/max ops.  For odd N the
    # lower median equals the median, so this matches torch.median(dim=0)[0]
    # for finite inputs.
    lo01 = jnp.minimum(p0, p1); hi01 = jnp.maximum(p0, p1)   # CE(0,1)
    lo34 = jnp.minimum(p3, p4); hi34 = jnp.maximum(p3, p4)   # CE(3,4)
    t3 = jnp.maximum(lo01, lo34)                             # CE(0,3) max side
    t1 = jnp.minimum(hi01, hi34)                             # CE(1,4) min side
    lo12 = jnp.minimum(t1, p2); hi12 = jnp.maximum(t1, p2)   # CE(1,2)
    t2 = jnp.minimum(hi12, t3)                               # CE(2,3) min side
    return jnp.maximum(lo12, t2)                             # CE(1,2) max side


def _lower_median(vals):
    n = len(vals)
    if n == 5:
        return _median_of_5(*vals)
    # Generic fallback: oblivious bubble-sort network, take lower median.
    vals = list(vals)
    for i in range(n):
        for j in range(n - 1 - i):
            lo = jnp.minimum(vals[j], vals[j + 1])
            hi = jnp.maximum(vals[j], vals[j + 1])
            vals[j], vals[j + 1] = lo, hi
    return vals[(n - 1) // 2]


def _ensemble_kernel(x_ref, w_ref, b_ref, o_ref, *, n_members, cpad):
    # x_ref: (TB, D)  w_ref: (D, N*cpad)  b_ref: (1, N*cpad)  o_ref: (TB, cpad)
    # Single fused MXU matmul covering all ensemble members + one bias add.
    preds = jnp.dot(x_ref[...], w_ref[...],
                    preferred_element_type=jnp.float32) + b_ref[...]
    # Static, 128-lane-aligned slices per member: zero-cost views.
    members = [preds[:, m * cpad:(m + 1) * cpad] for m in range(n_members)]
    o_ref[...] = _lower_median(members).astype(o_ref.dtype)


def ensemble_classifier(x, weights, biases, *, tb_max=256):
    """x: (B, D); weights: (N, D, C); biases: (N, 1, C) -> (B, C) f32.

    Element-wise lower median over N linear-classifier ensemble members.
    """
    B, D = x.shape
    N, Dw, C = weights.shape
    assert Dw == D and biases.shape == (N, 1, C)

    # ---- wrapper-side layout plumbing (pure data movement, no compute) ----
    # Pad each member's class dim to a full lane width and fuse the ensemble
    # into one (D, N*Cpad) weight slab / (1, N*Cpad) bias row.  Padded columns
    # are zero, so their predictions are 0 and get sliced away at the end.
    cpad = _round_up(C, LANE)
    w_f = jnp.pad(weights.astype(jnp.float32), ((0, 0), (0, 0), (0, cpad - C)))
    w_fused = jnp.transpose(w_f, (1, 0, 2)).reshape(D, N * cpad)
    b_f = jnp.pad(biases.astype(jnp.float32), ((0, 0), (0, 0), (0, cpad - C)))
    b_fused = jnp.transpose(b_f, (1, 0, 2)).reshape(1, N * cpad)

    # Tile the batch: Pallas double-buffers the x / out tiles (DMA overlaps
    # compute) while W / b stay resident in VMEM across grid steps.
    tb = min(tb_max, _round_up(B, 8))
    b_pad = _round_up(B, tb)
    x_p = x.astype(jnp.float32)
    if b_pad != B:
        x_p = jnp.pad(x_p, ((0, b_pad - B), (0, 0)))

    kernel = functools.partial(_ensemble_kernel, n_members=N, cpad=cpad)
    out = pl.pallas_call(
        kernel,
        out_shape=jax.ShapeDtypeStruct((b_pad, cpad), jnp.float32),
        grid=(b_pad // tb,),
        in_specs=[
            pl.BlockSpec((tb, D), lambda i: (i, 0)),          # batch tile of x
            pl.BlockSpec((D, N * cpad), lambda i: (0, 0)),    # fused W, resident
            pl.BlockSpec((1, N * cpad), lambda i: (0, 0)),    # fused b, resident
        ],
        out_specs=pl.BlockSpec((tb, cpad), lambda i: (i, 0)),  # lane-dense store
        compiler_params=pltpu.CompilerParams(
            dimension_semantics=("parallel",)),                # megacore sharding
    )(x_p, w_fused, b_fused)

    return out[:B, :C]


def reference(x, weights, biases):
    # Pure-JAX reference mirroring the PyTorch forward.
    n = weights.shape[0]
    preds = jnp.stack([x @ weights[i] + biases[i] for i in range(n)], axis=0)
    s = jnp.sort(preds, axis=0)
    return s[(n - 1) // 2]   # lower median (== median for odd n)


if __name__ == "__main__":
    B, D, C = 8, 32, 16

    key = jax.random.PRNGKey(0)
    kx, kw, kb = jax.random.split(key, 3)
    x = jax.random.normal(kx, (B, D), dtype=jnp.float32)
    weights = jax.random.normal(kw, (N_MEMBERS, D, C), dtype=jnp.float32) * 0.1
    biases = jax.random.normal(kb, (N_MEMBERS, 1, C), dtype=jnp.float32) * 0.1

    out = ensemble_classifier(x, weights, biases)
    out = jax.block_until_ready(out)

    ref = reference(x, weights, biases)
    assert out.shape == (B, C)
    assert jnp.allclose(out, ref, atol=1e-5, rtol=1e-5)

    print("KERNEL_OK")
</pallas_src>

<mosaic_0001>
module attributes {stable_mosaic.version = 11 : i64} {
  func.func @_ensemble_kernel(%arg0: i32, %arg1: memref<8x32xf32, #tpu.memory_space<vmem>>, %arg2: memref<32x640xf32, #tpu.memory_space<vmem>>, %arg3: memref<1x640xf32, #tpu.memory_space<vmem>>, %arg4: memref<8x128xf32, #tpu.memory_space<vmem>>) attributes {dimension_semantics = [#tpu.dimension_semantics<parallel>], iteration_bounds = array<i64: 1>, scalar_prefetch = 0 : i64, scratch_operands = 0 : i64, tpu.core_type = #tpu.core_type<tc>, window_params = [{transform_indices = @transform_0, window_bounds = array<i64: 8, 32>}, {pipeline_mode = #tpu.pipeline_mode<synchronous>, transform_indices = @transform_1, window_bounds = array<i64: 32, 640>}, {pipeline_mode = #tpu.pipeline_mode<synchronous>, transform_indices = @transform_2, window_bounds = array<i64: 1, 640>}, {transform_indices = @transform_3, window_bounds = array<i64: 8, 128>}]} {
    %c0 = arith.constant 0 : index
    %c0_0 = arith.constant 0 : index
    %0 = vector.load %arg1[%c0, %c0_0] : memref<8x32xf32, #tpu.memory_space<vmem>>, vector<8x32xf32>
    %c0_1 = arith.constant 0 : index
    %c0_2 = arith.constant 0 : index
    %1 = vector.load %arg2[%c0_1, %c0_2] : memref<32x640xf32, #tpu.memory_space<vmem>>, vector<32x640xf32>
    %cst = arith.constant dense<0.000000e+00> : vector<8x640xf32>
    %2 = tpu.matmul %0, %1, %cst {dimension_numbers = #tpu.dot_dimension_numbers<[1], [0], [0], [1], [0, 0, 1, 1], [], []>} : vector<8x32xf32>, vector<32x640xf32>, vector<8x640xf32> -> vector<8x640xf32>
    %c0_3 = arith.constant 0 : index
    %c0_4 = arith.constant 0 : index
    %3 = vector.load %arg3[%c0_3, %c0_4] : memref<1x640xf32, #tpu.memory_space<vmem>>, vector<1x640xf32>
    %4 = vector.broadcast %3 : vector<1x640xf32> to vector<8x640xf32>
    %5 = arith.addf %2, %4 : vector<8x640xf32>
    %6 = vector.extract_strided_slice %5 {offsets = [0, 0], sizes = [8, 128], strides = [1, 1]} : vector<8x640xf32> to vector<8x128xf32>
    %7 = vector.extract_strided_slice %5 {offsets = [0, 128], sizes = [8, 128], strides = [1, 1]} : vector<8x640xf32> to vector<8x128xf32>
    %8 = vector.extract_strided_slice %5 {offsets = [0, 256], sizes = [8, 128], strides = [1, 1]} : vector<8x640xf32> to vector<8x128xf32>
    %9 = vector.extract_strided_slice %5 {offsets = [0, 384], sizes = [8, 128], strides = [1, 1]} : vector<8x640xf32> to vector<8x128xf32>
    %10 = vector.extract_strided_slice %5 {offsets = [0, 512], sizes = [8, 128], strides = [1, 1]} : vector<8x640xf32> to vector<8x128xf32>
    %11 = arith.minimumf %6, %7 : vector<8x128xf32>
    %12 = arith.maximumf %6, %7 : vector<8x128xf32>
    %13 = arith.minimumf %9, %10 : vector<8x128xf32>
    %14 = arith.maximumf %9, %10 : vector<8x128xf32>
    %15 = arith.maximumf %11, %13 : vector<8x128xf32>
    %16 = arith.minimumf %12, %14 : vector<8x128xf32>
    %17 = arith.minimumf %16, %8 : vector<8x128xf32>
    %18 = arith.maximumf %16, %8 : vector<8x128xf32>
    %19 = arith.minimumf %18, %15 : vector<8x128xf32>
    %20 = arith.maximumf %17, %19 : vector<8x128xf32>
    %c0_5 = arith.constant 0 : index
    %c0_6 = arith.constant 0 : index
    %21 = vector.load %arg4[%c0_5, %c0_6] : memref<8x128xf32, #tpu.memory_space<vmem>>, vector<8x128xf32>
    tpu.vector_store %arg4[%c0_5, %c0_6], %20 {strides = array<i32>} : memref<8x128xf32, #tpu.memory_space<vmem>>, vector<8x128xf32>,
    return
  }
  func.func @transform_0(%arg0: i32) -> (i32, i32) {
    %c0_i32 = arith.constant 0 : i32
    %c0_i32_0 = arith.constant 0 : i32
    return %arg0, %c0_i32 : i32, i32
  }
  func.func @transform_1(%arg0: i32) -> (i32, i32) {
    %c0_i32 = arith.constant 0 : i32
    %c0_i32_0 = arith.constant 0 : i32
    %c0_i32_1 = arith.constant 0 : i32
    return %c0_i32, %c0_i32_0 : i32, i32
  }
  func.func @transform_2(%arg0: i32) -> (i32, i32) {
    %c0_i32 = arith.constant 0 : i32
    %c0_i32_0 = arith.constant 0 : i32
    %c0_i32_1 = arith.constant 0 : i32
    return %c0_i32, %c0_i32_0 : i32, i32
  }
  func.func @transform_3(%arg0: i32) -> (i32, i32) {
    %c0_i32 = arith.constant 0 : i32
    %c0_i32_0 = arith.constant 0 : i32
    return %arg0, %c0_i32 : i32, i32
  }
}

</mosaic_0001>

<llo_original>
// kernel: tpu_custom_call.1
$region0: #{tpu_custom_call.1}
  #allocation0 [shape = 'u32[]', space=smem, size = 0x4, offset = 0x4, fixed_abs, tag = 'smem constant byte address 0x4 - core index']
  #allocation1 [shape = 'u32[144,128]{1,0:T(1,128)}', space=vmem, size = 0x12000, scoped, tag = 'internal scratch']
  %s0 = inlined_call_operand.hbm [shape: f32[8,32], index: 0, kind: input, shape index: {}]
  %s1 = inlined_call_operand.hbm [shape: f32[32,640], index: 1, kind: input, shape index: {}]
  %s2 = inlined_call_operand.hbm [shape: f32[1,640], index: 2, kind: input, shape index: {}]
  %s3 = inlined_call_operand.hbm [shape: f32[8,128], index: 3, kind: output, shape index: {}]
  %s4 = sld [smem:[#allocation0]]
  $region34: #{tpu_custom_call.1} parent=0
    _
  %s6 = ssub.s32 1, %s4
  %s7 = scalar_select 0, %s6, %s4
  $region1: #{tpu_custom_call.1} parent=0
    #allocation2 [shape = 'u8[4096]{0}', space=vmem, size = 0x1000, scoped, tag = 'input window, operand 0, single buffered']
    #allocation3 [shape = 's32[1]{0}', space=sflag, size = 0x4, scoped, tag = 'scoped memory for tpu_custom_call.1']
    #allocation4 [shape = 's32[1]{0}', space=sflag, size = 0x4, scoped, tag = 'scoped memory for tpu_custom_call.1']
    #allocation5 [shape = 'u8[81920]{0}', space=vmem, size = 0x14000, scoped, tag = 'input window, operand 1, single buffered']
    #allocation6 [shape = 's32[1]{0}', space=sflag, size = 0x4, scoped, tag = 'scoped memory for tpu_custom_call.1']
    #allocation7 [shape = 'u8[2560]{0}', space=vmem, size = 0xc00, scoped, tag = 'input window, operand 2, single buffered']
    #allocation8 [shape = 'u8[4096]{0}', space=vmem, size = 0x1000, scoped, tag = 'output window, operand 0, single buffered']
    %8 = vsyncpa [#allocation3], 0
    %9 = vsyncpa [#allocation6], 0
    %10 = vsyncpa [#allocation4], 0
    // Predicated region
    $region2: #{tpu_custom_call.1} parent=1 // pred_check
      _
    $region3: #{tpu_custom_call.1} parent=1 // pred_check_branch
      %12 = sbr.rel (0) target = $region5
    $region4: #{tpu_custom_call.1} parent=1 // pred_region
      %s14 = ssub.s32 128, 128
      %15 = vsyncadd [#allocation3], %s14
      %s17 = sshll.u32 [#allocation2], 4
      %s18 = int_to_ptr.vmem [resolvable:$true] %s17
      %20 = dma.hbm_to_vmem [thread:$0]  %s0, 128, %s18, [#allocation3]
    $region5: #{tpu_custom_call.1} parent=1 // pred_fallthru
      _
    // Predicated region
    $region6: #{tpu_custom_call.1} parent=1 // pred_check
      _
    $region7: #{tpu_custom_call.1} parent=1 // pred_check_branch
      %22 = sbr.rel (0) target = $region9
    $region8: #{tpu_custom_call.1} parent=1 // pred_region
      %s24 = ssub.s32 2560, 2560
      %25 = vsyncadd [#allocation6], %s24
      %s26 = sshll.u32 [#allocation5], 4
      %s27 = int_to_ptr.vmem [resolvable:$true] %s26
      %32 = dma.hbm_to_vmem [thread:$0]  %s1, 2560, %s27, [#allocation6], 640, 640, 40
    $region9: #{tpu_custom_call.1} parent=1 // pred_fallthru
      _
    // Predicated region
    $region10: #{tpu_custom_call.1} parent=1 // pred_check
      _
    $region11: #{tpu_custom_call.1} parent=1 // pred_check_branch
      %34 = sbr.rel (0) target = $region13
    $region12: #{tpu_custom_call.1} parent=1 // pred_region
      %s36 = ssub.s32 80, 80
      %37 = vsyncadd [#allocation6], %s36
      %s39 = sshll.u32 [#allocation7], 4
      %s40 = int_to_ptr.vmem [resolvable:$true] %s39
      %42 = dma.hbm_to_vmem [thread:$0]  %s2, 80, %s40, [#allocation6]
    $region13: #{tpu_custom_call.1} parent=1 // pred_fallthru
      _
    // Predicated region
    $region14: #{tpu_custom_call.1} parent=1 // pred_check
      _
    $region15: #{tpu_custom_call.1} parent=1 // pred_check_branch
      %44 = sbr.rel (0) target = $region17
    $region16: #{tpu_custom_call.1} parent=1 // pred_region
      %45 = dma.done [#allocation3], 128
    $region17: #{tpu_custom_call.1} parent=1 // pred_fallthru
      _
    // Predicated region
    $region18: #{tpu_custom_call.1} parent=1 // pred_check
      _
    $region19: #{tpu_custom_call.1} parent=1 // pred_check_branch
      %47 = sbr.rel (0) target = $region21
    $region20: #{tpu_custom_call.1} parent=1 // pred_region
      %48 = dma.done [#allocation6], 2560
    $region21: #{tpu_custom_call.1} parent=1 // pred_fallthru
      _
    // Predicated region
    $region22: #{tpu_custom_call.1} parent=1 // pred_check
      _
    $region23: #{tpu_custom_call.1} parent=1 // pred_check_branch
      %50 = sbr.rel (0) target = $region25
    $region24: #{tpu_custom_call.1} parent=1 // pred_region
      %51 = dma.done [#allocation6], 80
    $region25: #{tpu_custom_call.1} parent=1 // pred_fallthru
      _
    %v52 = vld [vmem:[#allocation2] sm:$0xff]
    %v53 = vld [vmem:[#allocation5] sm:$0xff]
    %v54 = vld [vmem:[#allocation5 + $0x8] sm:$0xff]
    %v55 = vld [vmem:[#allocation5 + $0x10] sm:$0xff]
    %v56 = vld [vmem:[#allocation5 + $0x18] sm:$0xff]
    %v57 = vld [vmem:[#allocation5 + $0x20] sm:$0xff]
    %v58 = vld [vmem:[#allocation5 + $0x28] sm:$0xff]
    %v59 = vld [vmem:[#allocation5 + $0x30] sm:$0xff]
    %v60 = vld [vmem:[#allocation5 + $0x38] sm:$0xff]
    %v61 = vld [vmem:[#allocation5 + $0x40] sm:$0xff]
    %v62 = vld [vmem:[#allocation5 + $0x48] sm:$0xff]
    %v63 = vld [vmem:[#allocation5 + $0x50] sm:$0xff]
    %v64 = vld [vmem:[#allocation5 + $0x58] sm:$0xff]
    %v65 = vld [vmem:[#allocation5 + $0x60] sm:$0xff]
    %v66 = vld [vmem:[#allocation5 + $0x68] sm:$0xff]
    %v67 = vld [vmem:[#allocation5 + $0x70] sm:$0xff]
    %v68 = vld [vmem:[#allocation5 + $0x78] sm:$0xff]
    %v69 = vld [vmem:[#allocation5 + $0x80] sm:$0xff]
    %v70 = vld [vmem:[#allocation5 + $0x88] sm:$0xff]
    %v71 = vld [vmem:[#allocation5 + $0x90] sm:$0xff]
    %v72 = vld [vmem:[#allocation5 + $0x98] sm:$0xff]
    %v73 = vld [vmem:[#allocation7] sm:$0x1f]
    %v75 = vlaneseq
    %v76 = vshrl.u32 %v75, 7
    %v77 = vsub.s32 0, %v76
    %v78 = vrot.slane %v73, %v77
    %v79 = vlaneseq
    %v80 = vshrl.u32 %v79, 7
    %v81 = vsub.s32 1, %v80
    %v82 = vrot.slane %v73, %v81
    %v83 = vlaneseq
    %v84 = vshrl.u32 %v83, 7
    %v85 = vsub.s32 2, %v84
    %v86 = vrot.slane %v73, %v85
    %v87 = vlaneseq
    %v88 = vshrl.u32 %v87, 7
    %v89 = vsub.s32 3, %v88
    %v90 = vrot.slane %v73, %v89
    %v91 = vlaneseq
    %v92 = vshrl.u32 %v91, 7
    %v93 = vsub.s32 4, %v92
    %v94 = vrot.slane %v73, %v93
    %vm100 = vcmask 261120
    %v102 = vsel %vm100, %v52, 0
    %104 = vmatprep.subr.mxu0 0.0
    %105 = vmatpush1.msra.mxu0 0.0
    %106 = vmatprep.subr.mxu0 0.0
    %107 = vmatpush1.msra.mxu0 0.0
    %108 = vmatprep.subr.mxu0 0.0
    %109 = vmatpush1.msra.mxu0 0.0
    %110 = vmatprep.subr.mxu0 0.0
    %111 = vmatpush1.msra.mxu0 0.0
    %112 = vmatprep.subr.mxu0 0.0
    %113 = vmatpush1.msra.mxu0 0.0
    %114 = vmatprep.subr.mxu0 0.0
    %115 = vmatpush1.msra.mxu0 0.0
    %116 = vmatprep.subr.mxu0 0.0
    %117 = vmatpush1.msra.mxu0 0.0
    %118 = vmatprep.subr.mxu0 0.0
    %119 = vmatpush1.msra.mxu0 0.0
    %120 = vmatprep.subr.mxu0 0.0
    %121 = vmatpush1.msra.mxu0 0.0
    %122 = vmatprep.subr.mxu0 0.0
    %123 = vmatpush1.msra.mxu0 0.0
    %124 = vmatprep.subr.mxu0 0.0
    %125 = vmatpush1.msra.mxu0 0.0
    %126 = vmatprep.subr.mxu0 0.0
    %127 = vmatpush1.msra.mxu0 0.0
    %128 = vmatprep.subr.mxu0 %v69
    %129 = vmatpush1.msra.mxu0 %v68
    %130 = vmatprep.subr.mxu0 %v64
    %131 = vmatpush1.msra.mxu0 %v63
    %132 = vmatprep.subr.mxu0 %v59
    %133 = vmatpush1.msra.mxu0 %v58
    %134 = vmatprep.subr.mxu0 %v54
    %135 = vmatpush1.msra.mxu0 %v53
    %136 = vmatprep.subr.mxu0 0.0
    %137 = vmatpush2.msra.mxu0 0.0
    %138 = vmatprep.subr.mxu0 0.0
    %139 = vmatpush2.msra.mxu0 0.0
    %140 = vmatprep.subr.mxu0 0.0
    %141 = vmatpush2.msra.mxu0 0.0
    %142 = vmatprep.subr.mxu0 0.0
    %143 = vmatpush2.msra.mxu0 0.0
    %144 = vmatprep.subr.mxu0 0.0
    %145 = vmatpush2.msra.mxu0 0.0
    %146 = vmatprep.subr.mxu0 0.0
    %147 = vmatpush2.msra.mxu0 0.0
    %148 = vmatprep.subr.mxu0 0.0
    %149 = vmatpush2.msra.mxu0 0.0
    %150 = vmatprep.subr.mxu0 0.0
    %151 = vmatpush2.msra.mxu0 0.0
    %152 = vmatprep.subr.mxu0 0.0
    %153 = vmatpush2.msra.mxu0 0.0
    %154 = vmatprep.subr.mxu0 0.0
    %155 = vmatpush2.msra.mxu0 0.0
    %156 = vmatprep.subr.mxu0 0.0
    %157 = vmatpush2.msra.mxu0 0.0
    %158 = vmatprep.subr.mxu0 0.0
    %159 = vmatpush2.msra.mxu0 0.0
    %160 = vmatprep.subr.mxu0 0.0
    %161 = vmatpush2.msra.mxu0 0.0
    %162 = vmatprep.subr.mxu0 0.0
    %163 = vmatpush2.msra.mxu0 0.0
    %164 = vmatprep.subr.mxu0 0.0
    %165 = vmatpush2.msra.mxu0 0.0
    %166 = vmatprep.subr.mxu0 0.0
    %167 = vmatpush2.msra.mxu0 0.0
    %168 = vmatprep.mubr.f32.mxu0 0.0
    %169 = vmatmul.mubr.f32.gmra.mxu0 %v102
    %v170 = vpop.f32.mrf.mxu0
    %v171 = vadd.f32 %v78, %v170
    %v172 = vpop.f32.mrf.mxu0
    %v173 = vadd.f32 %v82, %v172
    %174 = vdwg.mxu0
    %175 = vmatprep.subr.mxu0 0.0
    %176 = vmatpush1.msra.mxu0 0.0
    %177 = vmatprep.subr.mxu0 0.0
    %178 = vmatpush1.msra.mxu0 0.0
    %179 = vmatprep.subr.mxu0 0.0
    %180 = vmatpush1.msra.mxu0 0.0
    %181 = vmatprep.subr.mxu0 0.0
    %182 = vmatpush1.msra.mxu0 0.0
    %183 = vmatprep.subr.mxu0 0.0
    %184 = vmatpush1.msra.mxu0 0.0
    %185 = vmatprep.subr.mxu0 0.0
    %186 = vmatpush1.msra.mxu0 0.0
    %187 = vmatprep.subr.mxu0 0.0
    %188 = vmatpush1.msra.mxu0 0.0
    %189 = vmatprep.subr.mxu0 0.0
    %190 = vmatpush1.msra.mxu0 0.0
    %191 = vmatprep.subr.mxu0 0.0
    %192 = vmatpush1.msra.mxu0 0.0
    %193 = vmatprep.subr.mxu0 0.0
    %194 = vmatpush1.msra.mxu0 0.0
    %195 = vmatprep.subr.mxu0 0.0
    %196 = vmatpush1.msra.mxu0 0.0
    %197 = vmatprep.subr.mxu0 0.0
    %198 = vmatpush1.msra.mxu0 0.0
    %199 = vmatprep.subr.mxu0 %v71
    %200 = vmatpush1.msra.mxu0 %v70
    %201 = vmatprep.subr.mxu0 %v66
    %202 = vmatpush1.msra.mxu0 %v65
    %203 = vmatprep.subr.mxu0 %v61
    %204 = vmatpush1.msra.mxu0 %v60
    %205 = vmatprep.subr.mxu0 %v56
    %206 = vmatpush1.msra.mxu0 %v55
    %207 = vmatprep.subr.mxu0 0.0
    %208 = vmatpush2.msra.mxu0 0.0
    %209 = vmatprep.subr.mxu0 0.0
    %210 = vmatpush2.msra.mxu0 0.0
    %211 = vmatprep.subr.mxu0 0.0
    %212 = vmatpush2.msra.mxu0 0.0
    %213 = vmatprep.subr.mxu0 0.0
    %214 = vmatpush2.msra.mxu0 0.0
    %215 = vmatprep.subr.mxu0 0.0
    %216 = vmatpush2.msra.mxu0 0.0
    %217 = vmatprep.subr.mxu0 0.0
    %218 = vmatpush2.msra.mxu0 0.0
    %219 = vmatprep.subr.mxu0 0.0
    %220 = vmatpush2.msra.mxu0 0.0
    %221 = vmatprep.subr.mxu0 0.0
    %222 = vmatpush2.msra.mxu0 0.0
    %223 = vmatprep.subr.mxu0 0.0
    %224 = vmatpush2.msra.mxu0 0.0
    %225 = vmatprep.subr.mxu0 0.0
    %226 = vmatpush2.msra.mxu0 0.0
    %227 = vmatprep.subr.mxu0 0.0
    %228 = vmatpush2.msra.mxu0 0.0
    %229 = vmatprep.subr.mxu0 0.0
    %230 = vmatpush2.msra.mxu0 0.0
    %231 = vmatprep.subr.mxu0 0.0
    %232 = vmatpush2.msra.mxu0 0.0
    %233 = vmatprep.subr.mxu0 0.0
    %234 = vmatpush2.msra.mxu0 0.0
    %235 = vmatprep.subr.mxu0 0.0
    %236 = vmatpush2.msra.mxu0 0.0
    %237 = vmatprep.subr.mxu0 0.0
    %238 = vmatpush2.msra.mxu0 0.0
    %239 = vmatprep.mubr.f32.mxu0 0.0
    %240 = vmatmul.mubr.f32.gmra.mxu0 %v102
    %v241 = vpop.f32.mrf.mxu0
    %v242 = vadd.f32 %v86, %v241
    %v243 = vpop.f32.mrf.mxu0
    %v244 = vadd.f32 %v90, %v243
    %245 = vdwg.mxu0
    %246 = vmatprep.subr.mxu0 0.0
    %247 = vmatpush1.msra.mxu0 0.0
    %248 = vmatprep.subr.mxu0 0.0
    %249 = vmatpush1.msra.mxu0 0.0
    %250 = vmatprep.subr.mxu0 0.0
    %251 = vmatpush1.msra.mxu0 0.0
    %252 = vmatprep.subr.mxu0 0.0
    %253 = vmatpush1.msra.mxu0 0.0
    %254 = vmatprep.subr.mxu0 0.0
    %255 = vmatpush1.msra.mxu0 0.0
    %256 = vmatprep.subr.mxu0 0.0
    %257 = vmatpush1.msra.mxu0 0.0
    %258 = vmatprep.subr.mxu0 0.0
    %259 = vmatpush1.msra.mxu0 0.0
    %260 = vmatprep.subr.mxu0 0.0
    %261 = vmatpush1.msra.mxu0 0.0
    %262 = vmatprep.subr.mxu0 0.0
    %263 = vmatpush1.msra.mxu0 0.0
    %264 = vmatprep.subr.mxu0 0.0
    %265 = vmatpush1.msra.mxu0 0.0
    %266 = vmatprep.subr.mxu0 0.0
    %267 = vmatpush1.msra.mxu0 0.0
    %268 = vmatprep.subr.mxu0 0.0
    %269 = vmatpush1.msra.mxu0 0.0
    %270 = vmatprep.subr.mxu0 0.0
    %271 = vmatpush1.msra.mxu0 %v72
    %272 = vmatprep.subr.mxu0 0.0
    %273 = vmatpush1.msra.mxu0 %v67
    %274 = vmatprep.subr.mxu0 0.0
    %275 = vmatpush1.msra.mxu0 %v62
    %276 = vmatprep.subr.mxu0 0.0
    %277 = vmatpush1.msra.mxu0 %v57
    %278 = vmatprep.subr.mxu0 0.0
    %279 = vmatpush2.msra.mxu0 0.0
    %280 = vmatprep.subr.mxu0 0.0
    %281 = vmatpush2.msra.mxu0 0.0
    %282 = vmatprep.subr.mxu0 0.0
    %283 = vmatpush2.msra.mxu0 0.0
    %284 = vmatprep.subr.mxu0 0.0
    %285 = vmatpush2.msra.mxu0 0.0
    %286 = vmatprep.subr.mxu0 0.0
    %287 = vmatpush2.msra.mxu0 0.0
    %288 = vmatprep.subr.mxu0 0.0
    %289 = vmatpush2.msra.mxu0 0.0
    %290 = vmatprep.subr.mxu0 0.0
    %291 = vmatpush2.msra.mxu0 0.0
    %292 = vmatprep.subr.mxu0 0.0
    %293 = vmatpush2.msra.mxu0 0.0
    %294 = vmatprep.subr.mxu0 0.0
    %295 = vmatpush2.msra.mxu0 0.0
    %296 = vmatprep.subr.mxu0 0.0
    %297 = vmatpush2.msra.mxu0 0.0
    %298 = vmatprep.subr.mxu0 0.0
    %299 = vmatpush2.msra.mxu0 0.0
    %300 = vmatprep.subr.mxu0 0.0
    %301 = vmatpush2.msra.mxu0 0.0
    %302 = vmatprep.subr.mxu0 0.0
    %303 = vmatpush2.msra.mxu0 0.0
    %304 = vmatprep.subr.mxu0 0.0
    %305 = vmatpush2.msra.mxu0 0.0
    %306 = vmatprep.subr.mxu0 0.0
    %307 = vmatpush2.msra.mxu0 0.0
    %308 = vmatprep.subr.mxu0 0.0
    %309 = vmatpush2.msra.mxu0 0.0
    %310 = vmatprep.mubr.f32.mxu0 0.0
    %311 = vmatmul.mubr.f32.gmra.mxu0 %v102
    %v312 = vpop.f32.mrf.mxu0
    %v313 = vadd.f32 %v94, %v312
    %v314 = vpop.f32.mrf.mxu0
    %315 = vdwg.mxu0
    %v316 = vmin.f32 %v171, %v173
    %v317 = vmax.f32 %v171, %v173
    %v318 = vmin.f32 %v244, %v313
    %v319 = vmax.f32 %v244, %v313
    %v320 = vmax.f32 %v316, %v318
    %v321 = vmin.f32 %v317, %v319
    %v322 = vmin.f32 %v321, %v242
    %v323 = vmax.f32 %v321, %v242
    %v324 = vmin.f32 %v323, %v320
    %v325 = vmax.f32 %v322, %v324
    %326 = vst [vmem:[#allocation8] sm:$0xff] %v325
    // Predicated region
    $region26: #{tpu_custom_call.1} parent=1 // pred_check
      _
    $region27: #{tpu_custom_call.1} parent=1 // pred_check_branch
      %328 = sbr.rel (0) target = $region29
    $region28: #{tpu_custom_call.1} parent=1 // pred_region
      %s330 = ssub.s32 128, 128
      %331 = vsyncadd [#allocation4], %s330
      %s333 = sshll.u32 [#allocation8], 4
      %s334 = int_to_ptr.vmem [resolvable:$true] %s333
      %336 = dma.vmem_to_hbm [thread:$0]  %s334, 128, %s3, [#allocation4]
    $region29: #{tpu_custom_call.1} parent=1 // pred_fallthru
      _
    // Predicated region
    $region30: #{tpu_custom_call.1} parent=1 // pred_check
      _
    $region31: #{tpu_custom_call.1} parent=1 // pred_check_branch
      %338 = sbr.rel (0) target = $region33
    $region32: #{tpu_custom_call.1} parent=1 // pred_region
      %339 = dma.done [#allocation4], 128
    $region33: #{tpu_custom_call.1} parent=1 // pred_fallthru
      _
    %340 = vsyncpa [#allocation3], 1
    %341 = vsyncpa [#allocation6], 1
    %342 = vsyncpa [#allocation4], 1

</llo_original>
